<compile_context>
chip_gen: v5e
topology: v5e:2x2
jax: 0.10.0
libtpu: 0.0.40
codegen_flags: <defaults>
</compile_context>

<pallas_src>
import jax
import jax.numpy as jnp
from jax.experimental import pallas as pl
from jax.experimental.pallas import tpu as pltpu


LANE = 128    # vreg lane width: last tile dim should be a multiple of this
SUBLANE = 8   # f32 sublane count: second-to-last tile dim multiple

# Dispatch thresholds (elements).
_XLA_BYPASS_MAX_ELEMS = 8192     # a few vregs: kernel launch/DMA dominates -> fused XLA
_FUSED_MAX_ELEMS = 1 << 20       # beyond this, whole-array VMEM residency stops paying


def _round_up(x, m):
    return ((x + m - 1) // m) * m


# --------------------------------------------------------------------------
# Small path: grid-less, folded-bias fused kernel (whole arrays in VMEM).
# --------------------------------------------------------------------------
def _fused_linear_kernel(x_ref, w_ref, o_ref):
    # x_ref: (N_pad, K_pad)  [x | 1], zero padded   (K_pad only 8-aligned)
    # w_ref: (K_pad, F_pad)  [[W^T], [b]], zero padded (F_pad lane-dense)
    # o_ref: (N_pad, F_pad)  unmasked lane-dense store
    o_ref[...] = jnp.dot(
        x_ref[...], w_ref[...], preferred_element_type=jnp.float32
    ).astype(o_ref.dtype)


def prepare_linear_params(w, b):
    """One-time parameter prep for the fused path (hoisted off the fwd path).

    Returns a dict with the raw (w, b) plus the augmented, pre-transposed,
    pre-padded weight [[W^T], [b]] used by the grid-less fused kernel.
    """
    out_f, in_f = w.shape
    k = in_f + 1                       # +1 row: folded bias
    k_pad = _round_up(k, SUBLANE)      # sublane alignment only (full-array block)
    f_pad = _round_up(out_f, LANE)     # lane-dense output columns
    w_aug = jnp.zeros((k_pad, f_pad), jnp.float32)
    w_aug = w_aug.at[:in_f, :out_f].set(w.astype(jnp.float32).T)
    w_aug = w_aug.at[in_f, :out_f].set(b.astype(jnp.float32))
    return {"w": w, "b": b, "w_aug": w_aug, "in_f": in_f, "out_f": out_f}


def _small_linear_pallas(x, w_aug, in_f, out_f):
    n = x.shape[0]
    k_pad, f_pad = w_aug.shape
    n_pad = n if n % SUBLANE == 0 else _round_up(n, SUBLANE)

    # x_aug = [x | 1]: one concat + (at most) one pad. Padded rows/cols are
    # zero, so discarded outputs are exactly 0 — no garbage risk.
    x_aug = jnp.concatenate(
        [x.astype(jnp.float32), jnp.ones((n, 1), jnp.float32)], axis=1)
    pad_rows = n_pad - n
    pad_cols = k_pad - (in_f + 1)
    if pad_rows or pad_cols:
        x_aug = jnp.pad(x_aug, ((0, pad_rows), (0, pad_cols)))

    y_pad = pl.pallas_call(
        _fused_linear_kernel,
        out_shape=jax.ShapeDtypeStruct((n_pad, f_pad), jnp.float32),
        in_specs=[
            pl.BlockSpec(memory_space=pltpu.MemorySpace.VMEM),
            pl.BlockSpec(memory_space=pltpu.MemorySpace.VMEM),
        ],
        out_specs=pl.BlockSpec(memory_space=pltpu.MemorySpace.VMEM),
    )(x_aug, w_aug)

    y = y_pad
    if n_pad != n or f_pad != out_f:
        y = y[:n, :out_f]
    return y.astype(x.dtype)


# --------------------------------------------------------------------------
# Scaled-up template: 3-D tiled grid, bf16 MXU feeds, f32 accumulator,
# bias added in the k==last epilogue (not as an extra K row / K step).
# --------------------------------------------------------------------------
def _tiled_linear_kernel(x_ref, w_ref, b_ref, o_ref, acc_ref):
    k = pl.program_id(2)

    @pl.when(k == 0)
    def _():
        acc_ref[...] = jnp.zeros_like(acc_ref)

    acc_ref[...] += jnp.dot(
        x_ref[...], w_ref[...], preferred_element_type=jnp.float32)

    @pl.when(k == pl.num_programs(2) - 1)
    def _():
        o_ref[...] = (acc_ref[...] + b_ref[...].astype(jnp.float32)).astype(o_ref.dtype)


def _tiled_linear_pallas(x, w, b, *, tm=256, tn=256, tk=512,
                         mxu_dtype=jnp.bfloat16):
    n, in_f = x.shape
    out_f = w.shape[0]

    # Clamp tiles to the (lane-aligned) problem; keep everything (8,128)-legal.
    tm = min(tm, _round_up(n, LANE))
    tn = min(tn, _round_up(out_f, LANE))
    tk = min(tk, _round_up(in_f, LANE))

    m_pad = _round_up(n, tm)
    n_pad = _round_up(out_f, tn)
    k_pad = _round_up(in_f, tk)

    # bf16 MXU feeds (f32 accumulation in the kernel); pads are zeros.
    x_p = jnp.pad(x.astype(jnp.float32),
                  ((0, m_pad - n), (0, k_pad - in_f))).astype(mxu_dtype)
    wt_p = jnp.pad(w.astype(jnp.float32).T,
                   ((0, k_pad - in_f), (0, n_pad - out_f))).astype(mxu_dtype)
    b_p = jnp.pad(b.astype(jnp.float32), (0, n_pad - out_f)).reshape(1, n_pad)

    grid = (m_pad // tm, n_pad // tn, k_pad // tk)

    y_pad = pl.pallas_call(
        _tiled_linear_kernel,
        out_shape=jax.ShapeDtypeStruct((m_pad, n_pad), jnp.float32),
        grid_spec=pltpu.PrefetchScalarGridSpec(
            num_scalar_prefetch=0,
            grid=grid,
            in_specs=[
                pl.BlockSpec((tm, tk), lambda i, j, k: (i, k)),
                pl.BlockSpec((tk, tn), lambda i, j, k: (k, j)),
                pl.BlockSpec((1, tn), lambda i, j, k: (0, j)),
            ],
            out_specs=pl.BlockSpec((tm, tn), lambda i, j, k: (i, j)),
            scratch_shapes=[pltpu.VMEM((tm, tn), jnp.float32)],
        ),
        compiler_params=pltpu.CompilerParams(
            # M/N parallel (shards across v7x's 2 TCs; neutral on v5e/v6e),
            # K is the reduction axis -> arbitrary, last in the grid.
            dimension_semantics=("parallel", "parallel", "arbitrary"),
            vmem_limit_bytes=64 * 1024 * 1024,
        ),
    )(x_p, wt_p, b_p)

    y = y_pad
    if m_pad != n or n_pad != out_f:
        y = y[:n, :out_f]
    return y.astype(x.dtype)


# --------------------------------------------------------------------------
# Forward dispatcher: y = x @ W.T + b  (nn.Linear semantics).
# --------------------------------------------------------------------------
def simple_net_forward(x, params, *, path="auto"):
    """SimpleNet forward.  path: "auto" | "xla" | "fused" | "tiled"."""
    w, b = params["w"], params["b"]
    n, in_f = x.shape
    out_f = w.shape[0]

    if path == "auto":
        tiny = max(n * in_f, in_f * out_f, n * out_f) <= _XLA_BYPASS_MAX_ELEMS
        big = (n * in_f + in_f * out_f + n * out_f) > _FUSED_MAX_ELEMS
        path = "xla" if tiny else ("tiled" if big else "fused")

    if path == "xla":
        # Tiny op (the actual SimpleNet shape is 8 FLOPs): a fused XLA matmul
        # beats kernel launch + DMA fixed cost.
        return (x @ w.T.astype(x.dtype) + b.astype(x.dtype)).astype(x.dtype)
    if path == "fused":
        return _small_linear_pallas(x, params["w_aug"],
                                    params["in_f"], params["out_f"])
    if path == "tiled":
        return _tiled_linear_pallas(x, w, b)
    raise ValueError(f"unknown path: {path}")


if __name__ == "__main__":
    key = jax.random.PRNGKey(0)
    kw, kb, kx2, kw2, kb2 = jax.random.split(key, 5)

    # --- SimpleNet: nn.Linear(1, 1), x = [[1.], [2.], [3.], [4.]] ----------
    # Mimic PyTorch's uniform(-1/sqrt(in_f), 1/sqrt(in_f)) init, in_f = 1.
    w = jax.random.uniform(kw, (1, 1), jnp.float32, minval=-1.0, maxval=1.0)
    b = jax.random.uniform(kb, (1,), jnp.float32, minval=-1.0, maxval=1.0)
    params = prepare_linear_params(w, b)      # one-time weight prep (hoisted)
    x = jnp.array([[1.0], [2.0], [3.0], [4.0]], dtype=jnp.float32)

    y_ref = x @ w.T + b

    # Auto path: at this size it bypasses to fused XLA (per perf review).
    y_auto = simple_net_forward(x, params, path="auto")
    jax.block_until_ready(y_auto)
    assert y_auto.shape == y_ref.shape, (y_auto.shape, y_ref.shape)
    assert jnp.allclose(y_auto, y_ref, atol=1e-6), (y_auto, y_ref)

    # Forced Pallas path: exercises the grid-less folded-bias kernel.
    y_fused = simple_net_forward(x, params, path="fused")
    jax.block_until_ready(y_fused)
    assert y_fused.shape == y_ref.shape, (y_fused.shape, y_ref.shape)
    assert jnp.allclose(y_fused, y_ref, atol=1e-6), (y_fused, y_ref)

    # Scaled-up template: tiled bf16-MXU grid path on a larger Linear.
    n2, in2, out2 = 512, 1024, 384
    x2 = jax.random.normal(kx2, (n2, in2), jnp.float32)
    w2 = jax.random.normal(kw2, (out2, in2), jnp.float32) / jnp.sqrt(float(in2))
    b2 = jax.random.normal(kb2, (out2,), jnp.float32)
    params2 = prepare_linear_params(w2, b2)
    y2 = simple_net_forward(x2, params2, path="tiled")
    jax.block_until_ready(y2)
    y2_ref = x2 @ w2.T + b2
    assert y2.shape == y2_ref.shape, (y2.shape, y2_ref.shape)
    # bf16 MXU feeds -> loosened tolerance (f32 accumulation preserved).
    assert jnp.allclose(y2, y2_ref, atol=1e-1, rtol=2e-2), \
        float(jnp.max(jnp.abs(y2 - y2_ref)))

    print("KERNEL_OK")
</pallas_src>

<mosaic_0001>
module attributes {stable_mosaic.version = 11 : i64} {
  func.func @_fused_linear_kernel(%arg0: memref<8x8xf32, #tpu.memory_space<vmem>>, %arg1: memref<8x128xf32, #tpu.memory_space<vmem>>, %arg2: memref<8x128xf32, #tpu.memory_space<vmem>>) attributes {dimension_semantics = [], scalar_prefetch = 0 : i64, scratch_operands = 0 : i64, tpu.core_type = #tpu.core_type<tc>} {
    %c0 = arith.constant 0 : index
    %c0_0 = arith.constant 0 : index
    %0 = vector.load %arg0[%c0, %c0_0] : memref<8x8xf32, #tpu.memory_space<vmem>>, vector<8x8xf32>
    %c0_1 = arith.constant 0 : index
    %c0_2 = arith.constant 0 : index
    %1 = vector.load %arg1[%c0_1, %c0_2] : memref<8x128xf32, #tpu.memory_space<vmem>>, vector<8x128xf32>
    %cst = arith.constant dense<0.000000e+00> : vector<8x128xf32>
    %2 = tpu.matmul %0, %1, %cst {dimension_numbers = #tpu.dot_dimension_numbers<[1], [0], [0], [1], [0, 0, 1, 1], [], []>} : vector<8x8xf32>, vector<8x128xf32>, vector<8x128xf32> -> vector<8x128xf32>
    %c0_3 = arith.constant 0 : index
    %c0_4 = arith.constant 0 : index
    %3 = vector.load %arg2[%c0_3, %c0_4] : memref<8x128xf32, #tpu.memory_space<vmem>>, vector<8x128xf32>
    tpu.vector_store %arg2[%c0_3, %c0_4], %2 {strides = array<i32>} : memref<8x128xf32, #tpu.memory_space<vmem>>, vector<8x128xf32>,
    return
  }
}

</mosaic_0001>

<llo_original>
// kernel: tpu_custom_call.1
$region0: #{tpu_custom_call.1}
  #allocation0 [shape = 'u32[]', space=smem, size = 0x4, offset = 0x4, fixed_abs, tag = 'smem constant byte address 0x4 - core index']
  #allocation1 [shape = 'u32[72,128]{1,0:T(1,128)}', space=vmem, size = 0x9000, scoped, tag = 'internal scratch']
  %s0 = inlined_call_operand.hbm [shape: f32[8,8], index: 0, kind: input, shape index: {}]
  %s1 = inlined_call_operand.hbm [shape: f32[8,128], index: 1, kind: input, shape index: {}]
  %s2 = inlined_call_operand.hbm [shape: f32[8,128], index: 2, kind: output, shape index: {}]
  %s3 = sld [smem:[#allocation0]]
  $region26: #{tpu_custom_call.1} parent=0
    _
  %s5 = ssub.s32 1, %s3
  %s6 = scalar_select 0, %s5, %s3
  $region1: #{tpu_custom_call.1} parent=0
    #allocation2 [shape = 'u8[4096]{0}', space=vmem, size = 0x1000, scoped, tag = 'input window, operand 0, single buffered']
    #allocation3 [shape = 's32[1]{0}', space=sflag, size = 0x4, scoped, tag = 'scoped memory for tpu_custom_call.1']
    #allocation4 [shape = 's32[1]{0}', space=sflag, size = 0x4, scoped, tag = 'scoped memory for tpu_custom_call.1']
    #allocation5 [shape = 'u8[4096]{0}', space=vmem, size = 0x1000, scoped, tag = 'input window, operand 1, single buffered']
    #allocation6 [shape = 's32[1]{0}', space=sflag, size = 0x4, scoped, tag = 'scoped memory for tpu_custom_call.1']
    #allocation7 [shape = 'u8[4096]{0}', space=vmem, size = 0x1000, scoped, tag = 'output window, operand 0, single buffered']
    %7 = vsyncpa [#allocation3], 0
    %8 = vsyncpa [#allocation6], 0
    %9 = vsyncpa [#allocation4], 0
    // Predicated region
    $region2: #{tpu_custom_call.1} parent=1 // pred_check
      _
    $region3: #{tpu_custom_call.1} parent=1 // pred_check_branch
      %11 = sbr.rel (0) target = $region5
    $region4: #{tpu_custom_call.1} parent=1 // pred_region
      %13 = vsyncadd [#allocation3], 0
      %s15 = sshll.u32 %s0, 4
      %s16 = int_to_ptr.hbm [resolvable:$true] %s15
      %s17 = sshll.u32 [#allocation2], 4
      %s18 = int_to_ptr.vmem [resolvable:$true] %s17
      %20 = dma.hbm_to_vmem [thread:$0]  %s16, 128, %s18, [#allocation3]
    $region5: #{tpu_custom_call.1} parent=1 // pred_fallthru
      _
    // Predicated region
    $region6: #{tpu_custom_call.1} parent=1 // pred_check
      _
    $region7: #{tpu_custom_call.1} parent=1 // pred_check_branch
      %22 = sbr.rel (0) target = $region9
    $region8: #{tpu_custom_call.1} parent=1 // pred_region
      %24 = vsyncadd [#allocation6], 0
      %s26 = sshll.u32 %s1, 4
      %s27 = int_to_ptr.hbm [resolvable:$true] %s26
      %s28 = sshll.u32 [#allocation5], 4
      %s29 = int_to_ptr.vmem [resolvable:$true] %s28
      %31 = dma.hbm_to_vmem [thread:$0]  %s27, 128, %s29, [#allocation6]
    $region9: #{tpu_custom_call.1} parent=1 // pred_fallthru
      _
    // Predicated region
    $region10: #{tpu_custom_call.1} parent=1 // pred_check
      _
    $region11: #{tpu_custom_call.1} parent=1 // pred_check_branch
      %33 = sbr.rel (0) target = $region13
    $region12: #{tpu_custom_call.1} parent=1 // pred_region
      %35 = dma.done [#allocation3], 128
    $region13: #{tpu_custom_call.1} parent=1 // pred_fallthru
      _
    // Predicated region
    $region14: #{tpu_custom_call.1} parent=1 // pred_check
      _
    $region15: #{tpu_custom_call.1} parent=1 // pred_check_branch
      %37 = sbr.rel (0) target = $region17
    $region16: #{tpu_custom_call.1} parent=1 // pred_region
      %39 = dma.done [#allocation6], 128
    $region17: #{tpu_custom_call.1} parent=1 // pred_fallthru
      _
    %v40 = vld [vmem:[#allocation2] sm:$0xff]
    %v41 = vld [vmem:[#allocation5] sm:$0xff]
    %vm42 = vcmask 64512
    %v44 = vsel %vm42, %v40, 0
    %46 = vmatpush.msra.mxu0 0.0
    %47 = vmatpush.msra.mxu0 0.0
    %48 = vmatpush.msra.mxu0 0.0
    %49 = vmatpush.msra.mxu0 0.0
    %50 = vmatpush.msra.mxu0 0.0
    %51 = vmatpush.msra.mxu0 0.0
    %52 = vmatpush.msra.mxu0 0.0
    %53 = vmatpush.msra.mxu0 0.0
    %54 = vmatpush.msra.mxu0 0.0
    %55 = vmatpush.msra.mxu0 0.0
    %56 = vmatpush.msra.mxu0 0.0
    %57 = vmatpush.msra.mxu0 0.0
    %58 = vmatpush.msra.mxu0 0.0
    %59 = vmatpush.msra.mxu0 0.0
    %60 = vmatpush.msra.mxu0 0.0
    %61 = vmatpush.msra.mxu0 %v41
    %62 = vmatmul.f32.gmra.mxu0 %v44
    %v63 = vpop.f32.mrf.mxu0
    %v64 = vadd.f32 0.0, %v63
    %65 = vdwg.mxu0
    %66 = vst [vmem:[#allocation7] sm:$0xff] %v64
    // Predicated region
    $region18: #{tpu_custom_call.1} parent=1 // pred_check
      _
    $region19: #{tpu_custom_call.1} parent=1 // pred_check_branch
      %68 = sbr.rel (0) target = $region21
    $region20: #{tpu_custom_call.1} parent=1 // pred_region
      %70 = vsyncadd [#allocation4], 0
      %s72 = sshll.u32 [#allocation7], 4
      %s73 = int_to_ptr.vmem [resolvable:$true] %s72
      %s74 = sshll.u32 %s2, 4
      %s75 = int_to_ptr.hbm [resolvable:$true] %s74
      %77 = dma.vmem_to_hbm [thread:$0]  %s73, 128, %s75, [#allocation4]
    $region21: #{tpu_custom_call.1} parent=1 // pred_fallthru
      _
    // Predicated region
    $region22: #{tpu_custom_call.1} parent=1 // pred_check
      _
    $region23: #{tpu_custom_call.1} parent=1 // pred_check_branch
      %79 = sbr.rel (0) target = $region25
    $region24: #{tpu_custom_call.1} parent=1 // pred_region
      %81 = dma.done [#allocation4], 128
    $region25: #{tpu_custom_call.1} parent=1 // pred_fallthru
      _
    %82 = vsyncpa [#allocation3], 1
    %83 = vsyncpa [#allocation6], 1
    %84 = vsyncpa [#allocation4], 1

</llo_original>
